<compile_context>
chip_gen: v5e
topology: v5e:2x2
jax: 0.10.0
libtpu: 0.0.40
codegen_flags: <defaults>
</compile_context>

<pallas_src>
import functools

import jax
import jax.numpy as jnp
from jax.experimental import pallas as pl
from jax.experimental.pallas import tpu as pltpu


# ---------------------------------------------------------------------------
# Per-generation VMEM budgets (queried once; conservative v7x-sized fallback)
# ---------------------------------------------------------------------------
def _detect_vmem_capacity_bytes():
    try:
        info = pltpu.get_tpu_info()
        cap = getattr(info, "vmem_capacity_bytes", None)
        if cap:
            return int(cap)
    except Exception:
        pass
    return 64 * 1024 * 1024  # smallest per-TC VMEM across v5e/v6e/v7x


_VMEM_CAP = _detect_vmem_capacity_bytes()
# Explicit scoped-VMEM limit handed to Mosaic (v5e's default is only 16 MiB).
_VMEM_LIMIT = min(int(0.8 * _VMEM_CAP), 100 * 1024 * 1024)
# Budget for the fused (per-batch VMEM-resident) fast path: 3 slabs x 2 bufs.
_FUSED_BUDGET = int(0.5 * _VMEM_CAP)
# Per-array block cap for the tiled streaming passes (~2 MiB v7x, ~4 MiB v6e).
_BLOCK_CAP = max(512 * 1024, min(4 * 1024 * 1024, _VMEM_LIMIT // 24))
# Below this slab size the fused path is grid-step-overhead bound unless the
# batch (== number of grid steps) is small.
_FUSED_MIN_SLAB_BYTES = 128 * 1024
_FUSED_SMALL_BATCH = 32


# ---------------------------------------------------------------------------
# Helpers
# ---------------------------------------------------------------------------
def _round_up(x, m):
    return ((x + m - 1) // m) * m


def _pick_block(total, align, max_size):
    """Largest multiple of `align` that divides `total` and is <= max_size.

    Callers pad `total` to a multiple of `align`, so a bounded divisor always
    exists (worst case `align` itself).  The full-extent fallback is kept only
    as a legality safety net.
    """
    b = min(total, max(align, max_size))
    b = (b // align) * align
    while b >= align:
        if total % b == 0:
            return b
        b -= align
    return total


# ---------------------------------------------------------------------------
# Kernels
# ---------------------------------------------------------------------------
def _fused_kernel(x1_ref, x2_ref, w1a_ref, w1b_ref, b1_ref, w2_ref, b2_ref,
                  o_ref):
    """One batch element per grid step, fully VMEM-resident.

    x1/x2/o blocks: (C, HW).  Gate math is done with channel COLUMN vectors
    (C, 1) so channels stay on sublanes and the final broadcast against the
    (C, HW) slab is a plain lane-broadcast (no relayout, no transpose).
    """
    x1 = x1_ref[...]                                           # (C, HW)
    x2 = x2_ref[...]
    inv_hw = jnp.float32(1.0 / x1.shape[-1])
    p1 = jnp.sum(x1, axis=-1, keepdims=True) * inv_hw          # (C, 1)
    p2 = jnp.sum(x2, axis=-1, keepdims=True) * inv_hw          # (C, 1)
    h = (jnp.dot(w1a_ref[...], p1, preferred_element_type=jnp.float32)
         + jnp.dot(w1b_ref[...], p2, preferred_element_type=jnp.float32)
         + b1_ref[...])                                        # (C, 1)
    h = jnp.where(h >= 0, h, 0.2 * h)                          # LeakyReLU(0.2)
    g = jnp.tanh(jnp.dot(w2_ref[...], h, preferred_element_type=jnp.float32)
                 + b2_ref[...])                                # (C, 1)
    o_ref[...] = g * x2 + x1


def _pool_kernel(x1_ref, x2_ref, s1_ref, s2_ref):
    """Row sums over the flattened spatial axis (tiled fallback, pass 1).

    grid = (row_blocks, hw_tiles); hw (last grid axis) is the reduction axis,
    the output block index is constant along it, so s*_ref act as resident
    accumulators.
    """
    @pl.when(pl.program_id(1) == 0)
    def _():
        s1_ref[...] = jnp.zeros_like(s1_ref)
        s2_ref[...] = jnp.zeros_like(s2_ref)

    s1_ref[...] += jnp.sum(x1_ref[...], axis=-1, keepdims=True)
    s2_ref[...] += jnp.sum(x2_ref[...], axis=-1, keepdims=True)


def _apply_kernel(g_ref, x1_ref, x2_ref, out_ref):
    """Streaming elementwise apply: out = g * x2 + x1 (g broadcast per row)."""
    out_ref[...] = g_ref[...] * x2_ref[...] + x1_ref[...]


# ---------------------------------------------------------------------------
# Paths
# ---------------------------------------------------------------------------
def _cab_plus_fused(x1f, x2f, w1, b1, w2, b2):
    """Single-pass path: grid over batch, (C, HW) slabs resident in VMEM."""
    B, C, HW = x1f.shape
    w1a = w1[:, :C]          # acts on pooled(x1)  (concat order [x1, x2])
    w1b = w1[:, C:]          # acts on pooled(x2)
    return pl.pallas_call(
        _fused_kernel,
        out_shape=jax.ShapeDtypeStruct((B, C, HW), jnp.float32),
        grid_spec=pltpu.PrefetchScalarGridSpec(
            num_scalar_prefetch=0,
            grid=(B,),
            in_specs=[
                pl.BlockSpec((None, C, HW), lambda b: (b, 0, 0)),   # x1
                pl.BlockSpec((None, C, HW), lambda b: (b, 0, 0)),   # x2
                pl.BlockSpec((C, C), lambda b: (0, 0)),             # w1[:, :C]
                pl.BlockSpec((C, C), lambda b: (0, 0)),             # w1[:, C:]
                pl.BlockSpec((C, 1), lambda b: (0, 0)),             # b1
                pl.BlockSpec((C, C), lambda b: (0, 0)),             # w2
                pl.BlockSpec((C, 1), lambda b: (0, 0)),             # b2
            ],
            out_specs=pl.BlockSpec((None, C, HW), lambda b: (b, 0, 0)),
        ),
        compiler_params=pltpu.CompilerParams(
            dimension_semantics=("parallel",),
            vmem_limit_bytes=_VMEM_LIMIT),
    )(x1f, x2f, w1a, w1b, b1.reshape(C, 1), w2, b2.reshape(C, 1))


def _cab_plus_tiled(x1f, x2f, w1, b1, w2, b2):
    """Fallback for slabs too large for VMEM: pool pass -> JAX gate -> apply."""
    B, C, HW = x1f.shape
    R = B * C
    x1r = x1f.reshape(R, HW)
    x2r = x2f.reshape(R, HW)

    # Pad to (8, 128) multiples so block choices are always bounded divisors.
    HW_pad = _round_up(HW, 128)
    R_pad = _round_up(R, 8)
    if (R_pad, HW_pad) != (R, HW):
        pad = ((0, R_pad - R), (0, HW_pad - HW))
        x1p = jnp.pad(x1r, pad)
        x2p = jnp.pad(x2r, pad)
    else:
        x1p, x2p = x1r, x2r

    thw = _pick_block(HW_pad, 128, min(HW_pad, 2048))
    trow_bytes_cap = max(8, (_BLOCK_CAP // (4 * thw)) // 8 * 8)
    # Keep >=2 row blocks when rows allow it so both v7x cores get parallel
    # work in the pool pass (whose HW axis is a serial reduction).
    trow_par_cap = R_pad // 2 if R_pad >= 32 else R_pad
    trow = _pick_block(R_pad, 8, max(8, min(trow_bytes_cap, trow_par_cap)))
    n_row, n_hw = R_pad // trow, HW_pad // thw

    # ---- pass 1: pooled sums per (batch, channel) row ----------------------
    s1, s2 = pl.pallas_call(
        _pool_kernel,
        out_shape=(jax.ShapeDtypeStruct((R_pad, 1), jnp.float32),
                   jax.ShapeDtypeStruct((R_pad, 1), jnp.float32)),
        grid_spec=pltpu.PrefetchScalarGridSpec(
            num_scalar_prefetch=0,
            grid=(n_row, n_hw),
            in_specs=[
                pl.BlockSpec((trow, thw), lambda r, s: (r, s)),   # x1
                pl.BlockSpec((trow, thw), lambda r, s: (r, s)),   # x2
            ],
            out_specs=[
                pl.BlockSpec((trow, 1), lambda r, s: (r, 0)),     # sum(x1)
                pl.BlockSpec((trow, 1), lambda r, s: (r, 0)),     # sum(x2)
            ],
        ),
        compiler_params=pltpu.CompilerParams(
            dimension_semantics=("parallel", "arbitrary"),
            vmem_limit_bytes=_VMEM_LIMIT),
    )(x1p, x2p)

    # ---- gate chain in plain JAX (tiny; XLA fuses it) -----------------------
    inv_hw = jnp.float32(1.0 / HW)
    p1 = (s1[:R, 0] * inv_hw).reshape(B, C)
    p2 = (s2[:R, 0] * inv_hw).reshape(B, C)
    h = p1 @ w1[:, :C].T + p2 @ w1[:, C:].T + b1              # conv1 (1x1)
    h = jnp.where(h >= 0, h, 0.2 * h)                          # LeakyReLU(0.2)
    g = jnp.tanh(h @ w2.T + b2)                                # conv2 + tanh

    gf = g.reshape(R, 1)
    if R_pad != R:
        gf = jnp.pad(gf, ((0, R_pad - R), (0, 0)))

    # ---- pass 3: streaming apply  out = g * x2 + x1 -------------------------
    out = pl.pallas_call(
        _apply_kernel,
        out_shape=jax.ShapeDtypeStruct((R_pad, HW_pad), jnp.float32),
        grid_spec=pltpu.PrefetchScalarGridSpec(
            num_scalar_prefetch=0,
            grid=(n_row, n_hw),
            in_specs=[
                pl.BlockSpec((trow, 1), lambda r, s: (r, 0)),     # gate
                pl.BlockSpec((trow, thw), lambda r, s: (r, s)),   # x1
                pl.BlockSpec((trow, thw), lambda r, s: (r, s)),   # x2
            ],
            out_specs=pl.BlockSpec((trow, thw), lambda r, s: (r, s)),
        ),
        compiler_params=pltpu.CompilerParams(
            dimension_semantics=("parallel", "parallel"),
            vmem_limit_bytes=_VMEM_LIMIT),
    )(gf, x1p, x2p)

    if (R_pad, HW_pad) != (R, HW):
        out = out[:R, :HW]
    return out.reshape(B, C, HW)


# ---------------------------------------------------------------------------
# Wrapper
# ---------------------------------------------------------------------------
def _cab_plus_impl(x1, x2, w1, b1, w2, b2, path):
    """x1, x2: (B, C, H, W) NCHW.  w1: (C, 2C), b1: (C,), w2: (C, C), b2: (C,)."""
    B, C, H, W = x1.shape
    HW = H * W
    assert x2.shape == x1.shape
    assert w1.shape == (C, 2 * C) and w2.shape == (C, C)

    x1f = x1.reshape(B, C, HW).astype(jnp.float32)
    x2f = x2.reshape(B, C, HW).astype(jnp.float32)
    w1f = w1.astype(jnp.float32)
    b1f = b1.astype(jnp.float32)
    w2f = w2.astype(jnp.float32)
    b2f = b2.astype(jnp.float32)

    slab_bytes = C * HW * 4
    fused_fits = 6 * slab_bytes + (4 * C * C + 2 * C) * 4 <= _FUSED_BUDGET
    fused_worth = slab_bytes >= _FUSED_MIN_SLAB_BYTES or B <= _FUSED_SMALL_BATCH

    if path == "fused" or (path == "auto" and fused_fits and fused_worth):
        out = _cab_plus_fused(x1f, x2f, w1f, b1f, w2f, b2f)
    else:
        out = _cab_plus_tiled(x1f, x2f, w1f, b1f, w2f, b2f)

    return out.reshape(B, C, H, W).astype(x1.dtype)


@functools.partial(jax.jit, static_argnames=("path",))
def cab_plus(x1, x2, w1, b1, w2, b2, path="auto"):
    return _cab_plus_impl(x1, x2, w1, b1, w2, b2, path)


def _reference(x1, x2, w1, b1, w2, b2):
    # Pure-JAX reference mirroring the PyTorch forward.
    x = jnp.concatenate([x1, x2], axis=1)                  # (B, 2C, H, W)
    p = jnp.mean(x, axis=(2, 3))                           # (B, 2C)
    h = p @ w1.T + b1                                      # (B, C)
    h = jnp.where(h >= 0, h, 0.2 * h)
    g = jnp.tanh(h @ w2.T + b2)                            # (B, C)
    g = g[:, :, None, None]
    return g * x2 + x1


if __name__ == "__main__":
    B, C, H, W = 2, 4, 16, 16
    in_channels, out_channels = 2 * C, C

    key = jax.random.PRNGKey(0)
    k1, k2, k3, k4, k5, k6 = jax.random.split(key, 6)

    x1 = jax.random.normal(k1, (B, C, H, W), dtype=jnp.float32)
    x2 = jax.random.normal(k2, (B, C, H, W), dtype=jnp.float32)

    # 1x1 conv weights are (Cout, Cin) matrices.
    w1 = 0.1 * jax.random.normal(k3, (out_channels, in_channels), dtype=jnp.float32)
    b1 = 0.1 * jax.random.normal(k4, (out_channels,), dtype=jnp.float32)
    w2 = 0.1 * jax.random.normal(k5, (out_channels, out_channels), dtype=jnp.float32)
    b2 = 0.1 * jax.random.normal(k6, (out_channels,), dtype=jnp.float32)

    ref = _reference(x1, x2, w1, b1, w2, b2)

    # Fast path (auto selects the fused single-pass kernel at this size).
    out_fused = jax.block_until_ready(cab_plus(x1, x2, w1, b1, w2, b2))
    assert out_fused.shape == (B, C, H, W)
    assert jnp.allclose(out_fused, ref, atol=1e-5, rtol=1e-5), "fused mismatch"

    # Tiled fallback path (exercised explicitly to keep it validated).
    out_tiled = jax.block_until_ready(cab_plus(x1, x2, w1, b1, w2, b2, path="tiled"))
    assert out_tiled.shape == (B, C, H, W)
    assert jnp.allclose(out_tiled, ref, atol=1e-5, rtol=1e-5), "tiled mismatch"

    print("KERNEL_OK")
</pallas_src>

<mosaic_0001>
module attributes {stable_mosaic.version = 11 : i64} {
  func.func @_fused_kernel(%arg0: i32, %arg1: memref<1x4x256xf32, #tpu.memory_space<vmem>>, %arg2: memref<1x4x256xf32, #tpu.memory_space<vmem>>, %arg3: memref<4x4xf32, #tpu.memory_space<vmem>>, %arg4: memref<4x4xf32, #tpu.memory_space<vmem>>, %arg5: memref<4x1xf32, #tpu.memory_space<vmem>>, %arg6: memref<4x4xf32, #tpu.memory_space<vmem>>, %arg7: memref<4x1xf32, #tpu.memory_space<vmem>>, %arg8: memref<1x4x256xf32, #tpu.memory_space<vmem>>) attributes {dimension_semantics = [#tpu.dimension_semantics<parallel>], iteration_bounds = array<i64: 2>, scalar_prefetch = 0 : i64, scratch_operands = 0 : i64, tpu.core_type = #tpu.core_type<tc>, window_params = [{transform_indices = @transform_0, window_bounds = array<i64: 1, 4, 256>}, {transform_indices = @transform_1, window_bounds = array<i64: 1, 4, 256>}, {pipeline_mode = #tpu.pipeline_mode<synchronous>, transform_indices = @transform_2, window_bounds = array<i64: 4, 4>}, {pipeline_mode = #tpu.pipeline_mode<synchronous>, transform_indices = @transform_3, window_bounds = array<i64: 4, 4>}, {pipeline_mode = #tpu.pipeline_mode<synchronous>, transform_indices = @transform_4, window_bounds = array<i64: 4, 1>}, {pipeline_mode = #tpu.pipeline_mode<synchronous>, transform_indices = @transform_5, window_bounds = array<i64: 4, 4>}, {pipeline_mode = #tpu.pipeline_mode<synchronous>, transform_indices = @transform_6, window_bounds = array<i64: 4, 1>}, {transform_indices = @transform_7, window_bounds = array<i64: 1, 4, 256>}]} {
    %c0 = arith.constant 0 : index
    %c0_0 = arith.constant 0 : index
    %c0_1 = arith.constant 0 : index
    %0 = vector.load %arg1[%c0, %c0_0, %c0_1] : memref<1x4x256xf32, #tpu.memory_space<vmem>>, vector<1x4x256xf32>
    %1 = vector.shape_cast %0 : vector<1x4x256xf32> to vector<4x256xf32>
    %c0_2 = arith.constant 0 : index
    %c0_3 = arith.constant 0 : index
    %c0_4 = arith.constant 0 : index
    %2 = vector.load %arg2[%c0_2, %c0_3, %c0_4] : memref<1x4x256xf32, #tpu.memory_space<vmem>>, vector<1x4x256xf32>
    %3 = vector.shape_cast %2 : vector<1x4x256xf32> to vector<4x256xf32>
    %cst = arith.constant dense<0.000000e+00> : vector<4xf32>
    %4 = vector.multi_reduction <add>, %1, %cst [1] : vector<4x256xf32> to vector<4xf32>
    %5 = vector.shape_cast %4 : vector<4xf32> to vector<4x1xf32>
    %cst_5 = arith.constant 3.906250e-03 : f32
    %6 = vector.broadcast %cst_5 : f32 to vector<4x1xf32>
    %7 = arith.mulf %5, %6 : vector<4x1xf32>
    %cst_6 = arith.constant dense<0.000000e+00> : vector<4xf32>
    %8 = vector.multi_reduction <add>, %3, %cst_6 [1] : vector<4x256xf32> to vector<4xf32>
    %9 = vector.shape_cast %8 : vector<4xf32> to vector<4x1xf32>
    %cst_7 = arith.constant 3.906250e-03 : f32
    %10 = vector.broadcast %cst_7 : f32 to vector<4x1xf32>
    %11 = arith.mulf %9, %10 : vector<4x1xf32>
    %c0_8 = arith.constant 0 : index
    %c0_9 = arith.constant 0 : index
    %12 = vector.load %arg3[%c0_8, %c0_9] : memref<4x4xf32, #tpu.memory_space<vmem>>, vector<4x4xf32>
    %cst_10 = arith.constant dense<0.000000e+00> : vector<4x1xf32>
    %13 = tpu.matmul %12, %7, %cst_10 {dimension_numbers = #tpu.dot_dimension_numbers<[1], [0], [0], [1], [0, 0, 1, 1], [], []>} : vector<4x4xf32>, vector<4x1xf32>, vector<4x1xf32> -> vector<4x1xf32>
    %c0_11 = arith.constant 0 : index
    %c0_12 = arith.constant 0 : index
    %14 = vector.load %arg4[%c0_11, %c0_12] : memref<4x4xf32, #tpu.memory_space<vmem>>, vector<4x4xf32>
    %cst_13 = arith.constant dense<0.000000e+00> : vector<4x1xf32>
    %15 = tpu.matmul %14, %11, %cst_13 {dimension_numbers = #tpu.dot_dimension_numbers<[1], [0], [0], [1], [0, 0, 1, 1], [], []>} : vector<4x4xf32>, vector<4x1xf32>, vector<4x1xf32> -> vector<4x1xf32>
    %16 = arith.addf %13, %15 : vector<4x1xf32>
    %c0_14 = arith.constant 0 : index
    %c0_15 = arith.constant 0 : index
    %17 = vector.load %arg5[%c0_14, %c0_15] : memref<4x1xf32, #tpu.memory_space<vmem>>, vector<4x1xf32>
    %18 = arith.addf %16, %17 : vector<4x1xf32>
    %cst_16 = arith.constant 0.000000e+00 : f32
    %19 = vector.broadcast %cst_16 : f32 to vector<4x1xf32>
    %20 = arith.cmpf oge, %18, %19 : vector<4x1xf32>
    %cst_17 = arith.constant 2.000000e-01 : f32
    %21 = vector.broadcast %cst_17 : f32 to vector<4x1xf32>
    %22 = arith.mulf %21, %18 : vector<4x1xf32>
    %23 = arith.select %20, %18, %22 : vector<4x1xi1>, vector<4x1xf32>
    %c0_18 = arith.constant 0 : index
    %c0_19 = arith.constant 0 : index
    %24 = vector.load %arg6[%c0_18, %c0_19] : memref<4x4xf32, #tpu.memory_space<vmem>>, vector<4x4xf32>
    %cst_20 = arith.constant dense<0.000000e+00> : vector<4x1xf32>
    %25 = tpu.matmul %24, %23, %cst_20 {dimension_numbers = #tpu.dot_dimension_numbers<[1], [0], [0], [1], [0, 0, 1, 1], [], []>} : vector<4x4xf32>, vector<4x1xf32>, vector<4x1xf32> -> vector<4x1xf32>
    %c0_21 = arith.constant 0 : index
    %c0_22 = arith.constant 0 : index
    %26 = vector.load %arg7[%c0_21, %c0_22] : memref<4x1xf32, #tpu.memory_space<vmem>>, vector<4x1xf32>
    %27 = arith.addf %25, %26 : vector<4x1xf32>
    %28 = math.tanh %27 : vector<4x1xf32>
    %29 = vector.broadcast %28 : vector<4x1xf32> to vector<4x256xf32>
    %30 = arith.mulf %29, %3 : vector<4x256xf32>
    %31 = arith.addf %30, %1 : vector<4x256xf32>
    %c0_23 = arith.constant 0 : index
    %c0_24 = arith.constant 0 : index
    %c0_25 = arith.constant 0 : index
    %32 = vector.load %arg8[%c0_23, %c0_24, %c0_25] : memref<1x4x256xf32, #tpu.memory_space<vmem>>, vector<1x4x256xf32>
    %33 = vector.shape_cast %32 : vector<1x4x256xf32> to vector<4x256xf32>
    %34 = vector.shape_cast %31 : vector<4x256xf32> to vector<1x4x256xf32>
    tpu.vector_store %arg8[%c0_23, %c0_24, %c0_25], %34 {strides = array<i32>} : memref<1x4x256xf32, #tpu.memory_space<vmem>>, vector<1x4x256xf32>,
    return
  }
  func.func @transform_0(%arg0: i32) -> (i32, i32, i32) {
    %c0_i32 = arith.constant 0 : i32
    %c0_i32_0 = arith.constant 0 : i32
    %c0_i32_1 = arith.constant 0 : i32
    return %arg0, %c0_i32, %c0_i32_0 : i32, i32, i32
  }
  func.func @transform_1(%arg0: i32) -> (i32, i32, i32) {
    %c0_i32 = arith.constant 0 : i32
    %c0_i32_0 = arith.constant 0 : i32
    %c0_i32_1 = arith.constant 0 : i32
    return %arg0, %c0_i32, %c0_i32_0 : i32, i32, i32
  }
  func.func @transform_2(%arg0: i32) -> (i32, i32) {
    %c0_i32 = arith.constant 0 : i32
    %c0_i32_0 = arith.constant 0 : i32
    %c0_i32_1 = arith.constant 0 : i32
    return %c0_i32, %c0_i32_0 : i32, i32
  }
  func.func @transform_3(%arg0: i32) -> (i32, i32) {
    %c0_i32 = arith.constant 0 : i32
    %c0_i32_0 = arith.constant 0 : i32
    %c0_i32_1 = arith.constant 0 : i32
    return %c0_i32, %c0_i32_0 : i32, i32
  }
  func.func @transform_4(%arg0: i32) -> (i32, i32) {
    %c0_i32 = arith.constant 0 : i32
    %c0_i32_0 = arith.constant 0 : i32
    %c0_i32_1 = arith.constant 0 : i32
    return %c0_i32, %c0_i32_0 : i32, i32
  }
  func.func @transform_5(%arg0: i32) -> (i32, i32) {
    %c0_i32 = arith.constant 0 : i32
    %c0_i32_0 = arith.constant 0 : i32
    %c0_i32_1 = arith.constant 0 : i32
    return %c0_i32, %c0_i32_0 : i32, i32
  }
  func.func @transform_6(%arg0: i32) -> (i32, i32) {
    %c0_i32 = arith.constant 0 : i32
    %c0_i32_0 = arith.constant 0 : i32
    %c0_i32_1 = arith.constant 0 : i32
    return %c0_i32, %c0_i32_0 : i32, i32
  }
  func.func @transform_7(%arg0: i32) -> (i32, i32, i32) {
    %c0_i32 = arith.constant 0 : i32
    %c0_i32_0 = arith.constant 0 : i32
    %c0_i32_1 = arith.constant 0 : i32
    return %arg0, %c0_i32, %c0_i32_0 : i32, i32, i32
  }
}

</mosaic_0001>

<llo_original>
// kernel: cab_plus.1
$region0: #{cab_plus.1}
  #allocation0 [shape = 'u32[]', space=smem, size = 0x4, offset = 0x4, fixed_abs, tag = 'smem constant byte address 0x4 - core index']
  #allocation1 [shape = 'u32[72,128]{1,0:T(1,128)}', space=vmem, size = 0x9000, scoped, tag = 'internal scratch']
  %s0 = inlined_call_operand.vmem [shape: f32[2,4,256], index: 0, kind: input, shape index: {}]
  %s1 = inlined_call_operand.vmem [shape: f32[2,4,256], index: 1, kind: input, shape index: {}]
  %s2 = inlined_call_operand.vmem [shape: f32[4,4], index: 2, kind: input, shape index: {}]
  %s3 = inlined_call_operand.vmem [shape: f32[4,4], index: 3, kind: input, shape index: {}]
  %s4 = inlined_call_operand.vmem [shape: f32[4,1], index: 4, kind: input, shape index: {}]
  %s5 = inlined_call_operand.vmem [shape: f32[4,4], index: 5, kind: input, shape index: {}]
  %s6 = inlined_call_operand.vmem [shape: f32[4,1], index: 6, kind: input, shape index: {}]
  %s7 = inlined_call_operand.vmem [shape: f32[2,4,256], index: 7, kind: output, shape index: {}]
  %s8 = sld [smem:[#allocation0]]
  $region61: #{cab_plus.1} parent=0
    _
  %s10 = ssub.s32 1, %s8
  %s11 = scalar_select 0, %s10, %s8
  loop: start=0, step=1, limit=4
  $region2: #{cab_plus.1} parent=0 // loop_pre_header
    _
  $region3: #{cab_plus.1} parent=0 // loop_header
    %s13 = sphi 0, %s17
    %p14 = scmp.ge.s32.totalorder %s13, 4
    %s23 = sphi 0, %s25
    %s26 = sphi 0, %s23
    %s27 = sphi 0, %s26
    %s43 = sphi 0, %s27
    %s49 = sphi 0, %s51
    %s52 = sphi 0, %s49
    %s53 = sphi 0, %s52
    %s69 = sphi 0, %s53
    %s73 = sphi 0, %s73
    %s75 = sphi 0, %s73
    %s76 = sphi 0, %s75
    %s90 = sphi 0, %s76
    %s94 = sphi 0, %s94
    %s96 = sphi 0, %s94
    %s97 = sphi 0, %s96
    %s111 = sphi 0, %s97
    %s115 = sphi 0, %s115
    %s117 = sphi 0, %s115
    %s118 = sphi 0, %s117
    %s132 = sphi 0, %s118
    %s136 = sphi 0, %s136
    %s138 = sphi 0, %s136
    %s139 = sphi 0, %s138
    %s153 = sphi 0, %s139
    %s157 = sphi 0, %s157
    %s159 = sphi 0, %s157
    %s160 = sphi 0, %s159
    %s174 = sphi 0, %s160
    %s180 = sphi 0, %s182
    %s183 = sphi 0, %s180
    %s184 = sphi 0, %s183
    %s200 = sphi 0, %s184
  $region4: #{cab_plus.1} parent=0 // loop_header_branch
    %16 = sbr.rel (%p14) target = $region8
  $region5: #{cab_plus.1} parent=0 // loop_body
    %s18 = ssub.s32 %s13, 1
    %s19 = ssub.s32 %s13, 2
    %s20 = sadd.s32 %s13, 1
    %s21 = ssub.s32 %s13, %s20
    %p22 = scmp.eq.s32.totalorder %s21, 0
    %s24 = sadd.s32 %s23, 1
    %s25 = scalar_select %p22, %s23, %s24
    %p28 = pneg %p22
    %p29 = scmp.eq.s32.totalorder %s13, 1
    %p30 = por %p28, %p29
    %p31 = scmp.ne.s32.totalorder %s23, %s26
    %p32 = scmp.eq.s32.totalorder %s13, 0
    %p33 = por %p31, %p32
    %p34 = scmp.ne.s32.totalorder %s23, %s26
    %p35 = scmp.eq.s32.totalorder %s18, 1
    %p36 = por %p34, %p35
    %p37 = scmp.ne.s32.totalorder %s26, %s27
    %p38 = scmp.eq.s32.totalorder %s18, 0
    %p39 = por %p37, %p38
    %p40 = scmp.ne.s32.totalorder %s26, %s27
    %p41 = scmp.eq.s32.totalorder %s19, 1
    %p42 = por %p40, %p41
    %p44 = scmp.ne.s32.totalorder %s27, %s43
    %p45 = scmp.eq.s32.totalorder %s19, 0
    %p46 = por %p44, %p45
    %s47 = ssub.s32 %s13, %s20
    %p48 = scmp.eq.s32.totalorder %s47, 0
    %s50 = sadd.s32 %s49, 1
    %s51 = scalar_select %p48, %s49, %s50
    %p54 = pneg %p48
    %p55 = scmp.eq.s32.totalorder %s13, 1
    %p56 = por %p54, %p55
    %p57 = scmp.ne.s32.totalorder %s49, %s52
    %p58 = scmp.eq.s32.totalorder %s13, 0
    %p59 = por %p57, %p58
    %p60 = scmp.ne.s32.totalorder %s49, %s52
    %p61 = scmp.eq.s32.totalorder %s18, 1
    %p62 = por %p60, %p61
    %p63 = scmp.ne.s32.totalorder %s52, %s53
    %p64 = scmp.eq.s32.totalorder %s18, 0
    %p65 = por %p63, %p64
    %p66 = scmp.ne.s32.totalorder %s52, %s53
    %p67 = scmp.eq.s32.totalorder %s19, 1
    %p68 = por %p66, %p67
    %p70 = scmp.ne.s32.totalorder %s53, %s69
    %p71 = scmp.eq.s32.totalorder %s19, 0
    %p72 = por %p70, %p71
    %s74 = sadd.s32 %s73, 1
    %p77 = scmp.eq.s32.totalorder %s13, 1
    %p78 = scmp.ne.s32.totalorder %s73, %s75
    %p79 = scmp.eq.s32.totalorder %s13, 0
    %p80 = por %p78, %p79
    %p81 = scmp.ne.s32.totalorder %s73, %s75
    %p82 = scmp.eq.s32.totalorder %s18, 1
    %p83 = por %p81, %p82
    %p84 = scmp.ne.s32.totalorder %s75, %s76
    %p85 = scmp.eq.s32.totalorder %s18, 0
    %p86 = por %p84, %p85
    %p87 = scmp.ne.s32.totalorder %s75, %s76
    %p88 = scmp.eq.s32.totalorder %s19, 1
    %p89 = por %p87, %p88
    %p91 = scmp.ne.s32.totalorder %s76, %s90
    %p92 = scmp.eq.s32.totalorder %s19, 0
    %p93 = por %p91, %p92
    %s95 = sadd.s32 %s94, 1
    %p98 = scmp.eq.s32.totalorder %s13, 1
    %p99 = scmp.ne.s32.totalorder %s94, %s96
    %p100 = scmp.eq.s32.totalorder %s13, 0
    %p101 = por %p99, %p100
    %p102 = scmp.ne.s32.totalorder %s94, %s96
    %p103 = scmp.eq.s32.totalorder %s18, 1
    %p104 = por %p102, %p103
    %p105 = scmp.ne.s32.totalorder %s96, %s97
    %p106 = scmp.eq.s32.totalorder %s18, 0
    %p107 = por %p105, %p106
    %p108 = scmp.ne.s32.totalorder %s96, %s97
    %p109 = scmp.eq.s32.totalorder %s19, 1
    %p110 = por %p108, %p109
    %p112 = scmp.ne.s32.totalorder %s97, %s111
    %p113 = scmp.eq.s32.totalorder %s19, 0
    %p114 = por %p112, %p113
    %s116 = sadd.s32 %s115, 1
    %p119 = scmp.eq.s32.totalorder %s13, 1
    %p120 = scmp.ne.s32.totalorder %s115, %s117
    %p121 = scmp.eq.s32.totalorder %s13, 0
    %p122 = por %p120, %p121
    %p123 = scmp.ne.s32.totalorder %s115, %s117
    %p124 = scmp.eq.s32.totalorder %s18, 1
    %p125 = por %p123, %p124
    %p126 = scmp.ne.s32.totalorder %s117, %s118
    %p127 = scmp.eq.s32.totalorder %s18, 0
    %p128 = por %p126, %p127
    %p129 = scmp.ne.s32.totalorder %s117, %s118
    %p130 = scmp.eq.s32.totalorder %s19, 1
    %p131 = por %p129, %p130
    %p133 = scmp.ne.s32.totalorder %s118, %s132
    %p134 = scmp.eq.s32.totalorder %s19, 0
    %p135 = por %p133, %p134
    %s137 = sadd.s32 %s136, 1
    %p140 = scmp.eq.s32.totalorder %s13, 1
    %p141 = scmp.ne.s32.totalorder %s136, %s138
    %p142 = scmp.eq.s32.totalorder %s13, 0
    %p143 = por %p141, %p142
    %p144 = scmp.ne.s32.totalorder %s136, %s138
    %p145 = scmp.eq.s32.totalorder %s18, 1
    %p146 = por %p144, %p145
    %p147 = scmp.ne.s32.totalorder %s138, %s139
    %p148 = scmp.eq.s32.totalorder %s18, 0
    %p149 = por %p147, %p148
    %p150 = scmp.ne.s32.totalorder %s138, %s139
    %p151 = scmp.eq.s32.totalorder %s19, 1
    %p152 = por %p150, %p151
    %p154 = scmp.ne.s32.totalorder %s139, %s153
    %p155 = scmp.eq.s32.totalorder %s19, 0
    %p156 = por %p154, %p155
    %s158 = sadd.s32 %s157, 1
    %p161 = scmp.eq.s32.totalorder %s13, 1
    %p162 = scmp.ne.s32.totalorder %s157, %s159
    %p163 = scmp.eq.s32.totalorder %s13, 0
    %p164 = por %p162, %p163
    %p165 = scmp.ne.s32.totalorder %s157, %s159
    %p166 = scmp.eq.s32.totalorder %s18, 1
    %p167 = por %p165, %p166
    %p168 = scmp.ne.s32.totalorder %s159, %s160
    %p169 = scmp.eq.s32.totalorder %s18, 0
    %p170 = por %p168, %p169
    %p171 = scmp.ne.s32.totalorder %s159, %s160
    %p172 = scmp.eq.s32.totalorder %s19, 1
    %p173 = por %p171, %p172
    %p175 = scmp.ne.s32.totalorder %s160, %s174
    %p176 = scmp.eq.s32.totalorder %s19, 0
    %p177 = por %p175, %p176
    %s178 = ssub.s32 %s13, %s20
    %p179 = scmp.eq.s32.totalorder %s178, 0
    %s181 = sadd.s32 %s180, 1
    %s182 = scalar_select %p179, %s180, %s181
    %p185 = pneg %p179
    %p186 = scmp.eq.s32.totalorder %s13, 1
    %p187 = por %p185, %p186
    %p188 = scmp.ne.s32.totalorder %s180, %s183
    %p189 = scmp.eq.s32.totalorder %s13, 0
    %p190 = por %p188, %p189
    %p191 = scmp.ne.s32.totalorder %s180, %s183
    %p192 = scmp.eq.s32.totalorder %s18, 1
    %p193 = por %p191, %p192
    %p194 = scmp.ne.s32.totalorder %s183, %s184
    %p195 = scmp.eq.s32.totalorder %s18, 0
    %p196 = por %p194, %p195
    %p197 = scmp.ne.s32.totalorder %s183, %s184
    %p198 = scmp.eq.s32.totalorder %s19, 1
    %p199 = por %p197, %p198
    %p201 = scmp.ne.s32.totalorder %s184, %s200
    %p202 = scmp.eq.s32.totalorder %s19, 0
    %p203 = por %p201, %p202
    %p204 = scmp.le.s32.totalorder 1, %s13
    %p205 = scmp.lt.s32.totalorder %s13, 3
    %p206 = pnand %p204, %p205
    %p207 = pneg %p206
    // Predicated region
    $region9: #{cab_plus.1} parent=5 // pred_check
      _
    $region10: #{cab_plus.1} parent=5 // pred_check_branch
      %209 = sbr.rel (%p206) target = $region12
    $region11: #{cab_plus.1} parent=5 // pred_region
      %s210 = ssub.s32 %s13, 1
      // Predicated region
      $region13: #{cab_plus.1} parent=11 // pred_check
        %p211 = pneg %p86
      $region14: #{cab_plus.1} parent=11 // pred_check_branch
        %213 = sbr.rel (%p211) target = $region16
      $region15: #{cab_plus.1} parent=11 // pred_region
        _
      $region16: #{cab_plus.1} parent=11 // pred_fallthru
        _
      // Predicated region
      $region17: #{cab_plus.1} parent=11 // pred_check
        %p214 = pneg %p107
      $region18: #{cab_plus.1} parent=11 // pred_check_branch
        %216 = sbr.rel (%p214) target = $region20
      $region19: #{cab_plus.1} parent=11 // pred_region
        _
      $region20: #{cab_plus.1} parent=11 // pred_fallthru
        _
      // Predicated region
      $region21: #{cab_plus.1} parent=11 // pred_check
        %p217 = pneg %p128
      $region22: #{cab_plus.1} parent=11 // pred_check_branch
        %219 = sbr.rel (%p217) target = $region24
      $region23: #{cab_plus.1} parent=11 // pred_region
        _
      $region24: #{cab_plus.1} parent=11 // pred_fallthru
        _
      // Predicated region
      $region25: #{cab_plus.1} parent=11 // pred_check
        %p220 = pneg %p149
      $region26: #{cab_plus.1} parent=11 // pred_check_branch
        %222 = sbr.rel (%p220) target = $region28
      $region27: #{cab_plus.1} parent=11 // pred_region
        _
      $region28: #{cab_plus.1} parent=11 // pred_fallthru
        _
      // Predicated region
      $region29: #{cab_plus.1} parent=11 // pred_check
        %p223 = pneg %p170
      $region30: #{cab_plus.1} parent=11 // pred_check_branch
        %225 = sbr.rel (%p223) target = $region32
      $region31: #{cab_plus.1} parent=11 // pred_region
        _
      $region32: #{cab_plus.1} parent=11 // pred_fallthru
        _
    $region12: #{cab_plus.1} parent=5 // pred_fallthru
      _
    %p226 = scmp.lt.s32.totalorder %s13, 2
    // Predicated region
    $region33: #{cab_plus.1} parent=5 // pred_check
      %p227 = pneg %p226
    $region34: #{cab_plus.1} parent=5 // pred_check_branch
      %229 = sbr.rel (%p227) target = $region36
    $region35: #{cab_plus.1} parent=5 // pred_region
      // Predicated region
      $region37: #{cab_plus.1} parent=35 // pred_check
        %p230 = pneg %p33
      $region38: #{cab_plus.1} parent=35 // pred_check_branch
        %232 = sbr.rel (%p230) target = $region40
      $region39: #{cab_plus.1} parent=35 // pred_region
        %p233 = scmp.lt.s32.totalorder %s13, 1
        %s234 = scalar_select %p233, %s13, 1
        %s235 = smul.addr %s234, 2
        %s236 = smul.addr %s235, 4
        %s237 = scalar_lea.vmem %s0, %s236
      $region40: #{cab_plus.1} parent=35 // pred_fallthru
        _
      // Predicated region
      $region41: #{cab_plus.1} parent=35 // pred_check
        %p238 = pneg %p59
      $region42: #{cab_plus.1} parent=35 // pred_check_branch
        %240 = sbr.rel (%p238) target = $region44
      $region43: #{cab_plus.1} parent=35 // pred_region
        %p241 = scmp.lt.s32.totalorder %s13, 1
        %s242 = scalar_select %p241, %s13, 1
        %s243 = smul.addr %s242, 2
        %s244 = smul.addr %s243, 4
        %s245 = scalar_lea.vmem %s1, %s244
      $region44: #{cab_plus.1} parent=35 // pred_fallthru
        _
    $region36: #{cab_plus.1} parent=5 // pred_fallthru
      _
    %p246 = scmp.le.s32.totalorder 1, %s13
    %p247 = scmp.lt.s32.totalorder %s13, 3
    %p248 = pnand %p246, %p247
    %p249 = pneg %p248
    // Predicated region
    $region45: #{cab_plus.1} parent=5 // pred_check
      _
    $region46: #{cab_plus.1} parent=5 // pred_check_branch
      %251 = sbr.rel (%p248) target = $region48
    $region47: #{cab_plus.1} parent=5 // pred_region
      %s252 = ssub.s32 %s13, 1
      %p253 = scmp.lt.s32.totalorder %s18, 1
      %s254 = scalar_select %p253, %s18, 1
      %s255 = smul.addr %s254, 2
      %s256 = smul.addr %s255, 4
      %s257 = scalar_lea.vmem %s0, %s256
      %p258 = pneg %p39
      %p259 = pneg %p36
      %p260 = scmp.lt.s32.totalorder %s18, 1
      %s261 = scalar_select %p260, %s18, 1
      %s262 = smul.addr %s261, 2
      %s263 = smul.addr %s262, 4
      %s264 = scalar_lea.vmem %s1, %s263
      %p265 = pneg %p65
      %p266 = pneg %p62
      %p267 = pneg %p86
      %p268 = pneg %p83
      %p269 = pneg %p107
      %p270 = pneg %p104
      %p271 = pneg %p128
      %p272 = pneg %p125
      %p273 = pneg %p149
      %p274 = pneg %p146
      %p275 = pneg %p170
      %p276 = pneg %p167
      %p277 = pneg %p196
      %p278 = pneg %p193
      %p279 = scmp.lt.s32.totalorder %s18, 1
      %s280 = scalar_select %p279, %s18, 1
      %s281 = smul.addr %s280, 2
      %s282 = smul.addr %s281, 4
      %s283 = scalar_lea.vmem %s7, %s282
      %p284 = scmp.lt.s32.totalorder %s18, 1
      %s285 = scalar_select %p284, %s18, 1
      %s286 = smul.addr %s285, 2
      %s287 = smul.addr %s286, 4
      %s288 = scalar_lea.vmem %s0, %s287
      %p289 = scmp.lt.s32.totalorder %s18, 1
      %s290 = scalar_select %p289, %s18, 1
      %s291 = smul.addr %s290, 2
      %s292 = smul.addr %s291, 4
      %s293 = scalar_lea.vmem %s1, %s292
      %p294 = scmp.lt.s32.totalorder %s18, 1
      %s295 = scalar_select %p294, %s18, 1
      %s296 = smul.addr %s295, 2
      %s297 = smul.addr %s296, 4
      %s298 = scalar_lea.vmem %s7, %s297
      %v299 = vld [vmem:[%s288] sm:$0xff]
      %v300 = vld [vmem:[%s293] sm:$0xff]
      %302 = vst [vmem:[#allocation1] ss:$2 sm:$0xff] %v299
      %v303 = vld.sshfl [vmem:[#allocation1] sm:$0xff pattern:$0x75316420]
      %v304 = vld.sshfl [vmem:[#allocation1 + $0x8] sm:$0xff pattern:$0x75316420]
      %vm307 = vcmask 1043456
      %v308 = vsel %vm307, %v303, 0.0
      %v309 = vsel %vm307, %v304, 0.0
      %v310 = vadd.f32 %v308, %v309
      %311 = vadd.xlane.f32.xlu0 %v310
      %v312 = vpop.xlane.xlu0 %311
      %v313 = vmul.f32 %v312, 0.00390625
      %315 = vst [vmem:[#allocation1] ss:$2 sm:$0xff] %v300
      %v316 = vld.sshfl [vmem:[#allocation1] sm:$0xff pattern:$0x75316420]
      %v317 = vld.sshfl [vmem:[#allocation1 + $0x8] sm:$0xff pattern:$0x75316420]
      %v320 = vsel %vm307, %v316, 0.0
      %v321 = vsel %vm307, %v317, 0.0
      %v322 = vadd.f32 %v320, %v321
      %323 = vadd.xlane.f32.xlu0 %v322
      %v324 = vpop.xlane.xlu0 %323
      %v325 = vmul.f32 %v324, 0.00390625
      %v326 = vld [vmem:[%s2] sm:$0xf]
      %v327 = vld [vmem:[%s3] sm:$0xf]
      %vm328 = vcmask 31744
      %v330 = vsel %vm328, %v327, 0
      %v333 = vsel %vm307, %v325, 0
      %335 = vmatpush.msra.mxu0 0.0
      %336 = vmatpush.msra.mxu0 0.0
      %337 = vmatpush.msra.mxu0 0.0
      %338 = vmatpush.msra.mxu0 0.0
      %339 = vmatpush.msra.mxu0 0.0
      %340 = vmatpush.msra.mxu0 0.0
      %341 = vmatpush.msra.mxu0 0.0
      %342 = vmatpush.msra.mxu0 0.0
      %343 = vmatpush.msra.mxu0 0.0
      %344 = vmatpush.msra.mxu0 0.0
      %345 = vmatpush.msra.mxu0 0.0
      %346 = vmatpush.msra.mxu0 0.0
      %347 = vmatpush.msra.mxu0 0.0
      %348 = vmatpush.msra.mxu0 0.0
      %349 = vmatpush.msra.mxu0 0.0
      %350 = vmatpush.msra.mxu0 %v333
      %351 = vmatmul.f32.gmra.mxu0 %v330
      %v352 = vpop.f32.mrf.mxu0
      %v353 = vadd.f32 0.0, %v352
      %354 = vdwg.mxu0
      %v356 = vsel %vm328, %v326, 0
      %v359 = vsel %vm307, %v313, 0
      %361 = vmatpush.msra.mxu0 0.0
      %362 = vmatpush.msra.mxu0 0.0
      %363 = vmatpush.msra.mxu0 0.0
      %364 = vmatpush.msra.mxu0 0.0
      %365 = vmatpush.msra.mxu0 0.0
      %366 = vmatpush.msra.mxu0 0.0
      %367 = vmatpush.msra.mxu0 0.0
      %368 = vmatpush.msra.mxu0 0.0
      %369 = vmatpush.msra.mxu0 0.0
      %370 = vmatpush.msra.mxu0 0.0
      %371 = vmatpush.msra.mxu0 0.0
      %372 = vmatpush.msra.mxu0 0.0
      %373 = vmatpush.msra.mxu0 0.0
      %374 = vmatpush.msra.mxu0 0.0
      %375 = vmatpush.msra.mxu0 0.0
      %376 = vmatpush.msra.mxu0 %v359
      %377 = vmatmul.f32.gmra.mxu0 %v356
      %v378 = vpop.f32.mrf.mxu0
      %v379 = vadd.f32 %v353, %v378
      %380 = vdwg.mxu0
      %v381 = vld [vmem:[%s4] sm:$0xf]
      %v382 = vadd.f32 %v379, %v381
      %vm383 = vcmp.ge.f32.partialorder %v382, 0.0
      %v384 = vmul.f32 %v382, 0.2
      %v385 = vsel %vm383, %v382, %v384
      %v386 = vld [vmem:[%s5] sm:$0xf]
      %v387 = vld [vmem:[%s6] sm:$0xf]
      %v389 = vsel %vm328, %v386, 0
      %v392 = vsel %vm307, %v385, 0
      %394 = vmatpush.msra.mxu0 0.0
      %395 = vmatpush.msra.mxu0 0.0
      %396 = vmatpush.msra.mxu0 0.0
      %397 = vmatpush.msra.mxu0 0.0
      %398 = vmatpush.msra.mxu0 0.0
      %399 = vmatpush.msra.mxu0 0.0
      %400 = vmatpush.msra.mxu0 0.0
      %401 = vmatpush.msra.mxu0 0.0
      %402 = vmatpush.msra.mxu0 0.0
      %403 = vmatpush.msra.mxu0 0.0
      %404 = vmatpush.msra.mxu0 0.0
      %405 = vmatpush.msra.mxu0 0.0
      %406 = vmatpush.msra.mxu0 0.0
      %407 = vmatpush.msra.mxu0 0.0
      %408 = vmatpush.msra.mxu0 0.0
      %409 = vmatpush.msra.mxu0 %v392
      %410 = vmatmul.f32.gmra.mxu0 %v389
      %v411 = vpop.f32.mrf.mxu0
      %v412 = vadd.f32 %v387, %v411
      %413 = vdwg.mxu0
      %v414 = vtanh.pop %v412
      %416 = vset.pattern.permute.xlu0 0
      %417 = vperm.xlu0 %416, %v414
      %v418 = vpop.permute.xlu0 %417
      %420 = vst [vmem:[#allocation1] ss:$2 sm:$0xff] %v300
      %v421 = vld.sshfl [vmem:[#allocation1] sm:$0xff pattern:$0x75316420]
      %v422 = vld.sshfl [vmem:[#allocation1 + $0x8] sm:$0xff pattern:$0x75316420]
      %v425 = vmul.f32 %v418, %v421
      %v426 = vmul.f32 %v418, %v422
      %427 = vst [vmem:[#allocation1] ss:$2 sm:$0xff] %v299
      %v428 = vld.sshfl [vmem:[#allocation1] sm:$0xff pattern:$0x75316420]
      %v429 = vld.sshfl [vmem:[#allocation1 + $0x8] sm:$0xff pattern:$0x75316420]
      %v432 = vadd.f32 %v425, %v428
      %v433 = vadd.f32 %v426, %v429
      %v436 = vrot.slane %v433, 4
      %v437 = vsel %vm307, %v432, %v436
      %439 = vst [vmem:[%s298] sm:$0xff] %v437
      %p440 = scmp.lt.s32.totalorder %s18, 1
      %s441 = scalar_select %p440, %s18, 1
      %s442 = smul.addr %s441, 2
      %s443 = smul.addr %s442, 4
      %s444 = scalar_lea.vmem %s7, %s443
      // Predicated region
      $region49: #{cab_plus.1} parent=47 // pred_check
        %p445 = pneg %p193
      $region50: #{cab_plus.1} parent=47 // pred_check_branch
        %447 = sbr.rel (%p445) target = $region52
      $region51: #{cab_plus.1} parent=47 // pred_region
        _
      $region52: #{cab_plus.1} parent=47 // pred_fallthru
        _
    $region48: #{cab_plus.1} parent=5 // pred_fallthru
      _
    %p448 = scmp.le.s32.totalorder 2, %s13
    // Predicated region
    $region53: #{cab_plus.1} parent=5 // pred_check
      %p449 = pneg %p448
    $region54: #{cab_plus.1} parent=5 // pred_check_branch
      %451 = sbr.rel (%p449) target = $region56
    $region55: #{cab_plus.1} parent=5 // pred_region
      %s452 = ssub.s32 %s13, 2
      // Predicated region
      $region57: #{cab_plus.1} parent=55 // pred_check
        %p453 = pneg %p199
      $region58: #{cab_plus.1} parent=55 // pred_check_branch
        %455 = sbr.rel (%p453) target = $region60
      $region59: #{cab_plus.1} parent=55 // pred_region
        %p456 = scmp.lt.s32.totalorder %s19, 1
        %s457 = scalar_select %p456, %s19, 1
        %s458 = smul.addr %s457, 2
        %s459 = smul.addr %s458, 4
        %s460 = scalar_lea.vmem %s7, %s459
      $region60: #{cab_plus.1} parent=55 // pred_fallthru
        _
    $region56: #{cab_plus.1} parent=5 // pred_fallthru
      _
  $region6: #{cab_plus.1} parent=0 // loop_footer
    %s17 = sadd.s32 1, %s13
  $region7: #{cab_plus.1} parent=0 // loop_footer_branch
    %12 = sbr.rel target = $region3
  $region8: #{cab_plus.1} parent=0 // loop_exit
    _

</llo_original>
